<compile_context>
chip_gen: v6e
topology: v6e:2x2x1
jax: 0.10.0
libtpu: 0.0.40
codegen_flags: <defaults>
</compile_context>

<pallas_src>
import functools

import jax
import jax.numpy as jnp
from jax.experimental import pallas as pl
from jax.experimental.pallas import tpu as pltpu

LANE = 128
SUBLANE = 8


def get_layer_sizes_from_arch(arch):
    """get layer_sizes from architecture layer sizes description"""
    return [[m, n] for m, n in zip(arch[:-1], arch[1:])]


def _round_up(x, m):
    return ((x + m - 1) // m) * m


# --------------------------- fused Pallas kernel --------------------------- #

def _fused_mlp_kernel(*refs, num_layers):
    """refs = (x_ref, w0, b0, w1, b1, ..., o_ref); everything padded lane-dense.

    Each w_i is stored (in_pad, out_pad) so the contraction is the standard
    (B, m) @ (m, n) MXU form (no transpose inside the kernel). Intermediate
    activations never leave vregs/VMEM. Last layer writes the pre-activation.
    Zero-padding is exact: padded bias lanes are 0, tanh(0) = 0, and padded
    weight rows are 0, so padded lanes stay 0 through every layer.
    """
    x_ref = refs[0]
    o_ref = refs[-1]
    h = x_ref[...]
    for i in range(num_layers):
        w = refs[1 + 2 * i][...]
        b = refs[2 + 2 * i][...]
        h = jnp.dot(h, w, preferred_element_type=jnp.float32) + b
        if i < num_layers - 1:
            h = jnp.tanh(h)
    o_ref[...] = h.astype(o_ref.dtype)


def fused_mlp(x, weights, biases):
    """x: (B, d0); weights[i]: (n_i, m_i) (PyTorch Linear layout);
    biases[i]: (n_i,). Returns (B, n_last) pre-activation of the last layer.
    Entire network runs as one pallas_call (single resident VMEM block)."""
    num_layers = len(weights)
    batch, d0 = x.shape
    bp = _round_up(max(batch, SUBLANE), SUBLANE)

    dims = [d0] + [int(w.shape[0]) for w in weights]
    pdims = [_round_up(d, LANE) for d in dims]

    # Lane-dense, zero-padded activations end to end.
    xp = jnp.zeros((bp, pdims[0]), x.dtype).at[:batch, :d0].set(x)

    operands = [xp]
    for i, (w, b) in enumerate(zip(weights, biases)):
        n_out, n_in = w.shape
        # Transpose once here (free under jit) -> (in, out), padded to 128s.
        wt = jnp.zeros((pdims[i], pdims[i + 1]), w.dtype)
        wt = wt.at[:n_in, :n_out].set(w.T)
        bt = jnp.zeros((1, pdims[i + 1]), b.dtype).at[0, :n_out].set(b)
        operands += [wt, bt]

    kernel = functools.partial(_fused_mlp_kernel, num_layers=num_layers)
    out = pl.pallas_call(
        kernel,
        out_shape=jax.ShapeDtypeStruct((bp, pdims[-1]), x.dtype),
        in_specs=[pl.BlockSpec(memory_space=pltpu.MemorySpace.VMEM)]
        * len(operands),
        out_specs=pl.BlockSpec(memory_space=pltpu.MemorySpace.VMEM),
    )(*operands)
    return out[:batch, :dims[-1]]


# ------------------------------- BNN model --------------------------------- #

def _bnn_forward(inputs, key, mean, log_std, *, layer_sizes):
    """Full forward under one jit: sample -> unpack -> fused Pallas MLP."""
    num_weight_samples = sum((m + 1) * n for m, n in layer_sizes)
    # torch.randn(num_weight_samples, 1) -> deterministic JAX normal draw.
    # TODO(synk): sampling could be fused into the kernel with
    # pltpu.prng_seed/prng_random_bits, but the per-layer unpack reshapes are
    # cleanest as shape-glue here; XLA fuses these few tiny elementwise ops.
    eps = jax.random.normal(key, (num_weight_samples, 1), dtype=jnp.float32)
    sampled_weights = mean + jnp.exp(log_std) * eps          # (N, 1)

    flat = sampled_weights.reshape(-1)
    ws, bs = [], []
    off = 0
    for m, n in layer_sizes:                                  # weights first
        ws.append(flat[off:off + m * n].reshape(n, m))        # (out, in)
        off += m * n
    for _, n in layer_sizes:                                  # then biases
        bs.append(flat[off:off + n])
        off += n

    outputs = fused_mlp(inputs, ws, bs)
    return outputs, sampled_weights


class BNNPallas:
    def __init__(self, arch, mean, log_std):
        self.layer_sizes = get_layer_sizes_from_arch(arch)
        self.num_weight_samples = sum((m + 1) * n for m, n in self.layer_sizes)
        self.mean = mean            # (num_weight_samples, 1)
        self.log_std = log_std      # (num_weight_samples, 1)
        self._forward_jit = jax.jit(functools.partial(
            _bnn_forward, layer_sizes=tuple(map(tuple, self.layer_sizes))))

    def forward(self, inputs, key):
        return self._forward_jit(inputs, key, self.mean, self.log_std)


# ------------------------------- reference --------------------------------- #

def reference_forward(bnn, inputs, key):
    eps = jax.random.normal(
        key, (bnn.num_weight_samples, 1), dtype=jnp.float32)
    sampled = bnn.mean + jnp.exp(bnn.log_std) * eps
    flat = sampled.reshape(-1)
    ws, bs = [], []
    off = 0
    for m, n in bnn.layer_sizes:
        ws.append(flat[off:off + m * n].reshape(n, m))
        off += m * n
    for _, n in bnn.layer_sizes:
        bs.append(flat[off:off + n])
        off += n
    x = inputs
    out = x
    for w, b in zip(ws, bs):
        out = x @ w.T + b
        x = jnp.tanh(out)
    return out, sampled


# ---------------------------------- main ------------------------------------ #

if __name__ == "__main__":
    arch = [8, 32, 16, 4]
    batch = 8

    layer_sizes = get_layer_sizes_from_arch(arch)
    num_weight_samples = sum((m + 1) * n for m, n in layer_sizes)

    key = jax.random.PRNGKey(0)
    k_in, k_mean, k_eps = jax.random.split(key, 3)

    # Deterministic "variational" parameters (synthetic, not a checkpoint).
    mean = 0.1 * jax.random.normal(
        k_mean, (num_weight_samples, 1), dtype=jnp.float32)
    log_std = jnp.full((num_weight_samples, 1), -2.0, dtype=jnp.float32)

    inputs = jax.random.normal(k_in, (batch, arch[0]), dtype=jnp.float32)

    bnn = BNNPallas(arch, mean, log_std)

    outputs, sampled_weights = bnn.forward(inputs, k_eps)
    outputs = jax.block_until_ready(outputs)
    sampled_weights = jax.block_until_ready(sampled_weights)

    # Correctness check against plain-JAX reference of the same math.
    ref_out, ref_sampled = reference_forward(bnn, inputs, k_eps)
    assert outputs.shape == (batch, arch[-1])
    assert sampled_weights.shape == (num_weight_samples, 1)
    assert jnp.allclose(outputs, ref_out, atol=1e-5, rtol=1e-5)
    assert jnp.allclose(sampled_weights, ref_sampled)

    print("KERNEL_OK")
</pallas_src>

<mosaic_0001>
module attributes {stable_mosaic.version = 11 : i64} {
  func.func @_fused_mlp_kernel(%arg0: memref<8x128xf32, #tpu.memory_space<vmem>>, %arg1: memref<128x128xf32, #tpu.memory_space<vmem>>, %arg2: memref<1x128xf32, #tpu.memory_space<vmem>>, %arg3: memref<128x128xf32, #tpu.memory_space<vmem>>, %arg4: memref<1x128xf32, #tpu.memory_space<vmem>>, %arg5: memref<128x128xf32, #tpu.memory_space<vmem>>, %arg6: memref<1x128xf32, #tpu.memory_space<vmem>>, %arg7: memref<8x128xf32, #tpu.memory_space<vmem>>) attributes {dimension_semantics = [], scalar_prefetch = 0 : i64, scratch_operands = 0 : i64, tpu.core_type = #tpu.core_type<tc>} {
    %c0 = arith.constant 0 : index
    %c0_0 = arith.constant 0 : index
    %0 = vector.load %arg0[%c0, %c0_0] : memref<8x128xf32, #tpu.memory_space<vmem>>, vector<8x128xf32>
    %c0_1 = arith.constant 0 : index
    %c0_2 = arith.constant 0 : index
    %1 = vector.load %arg1[%c0_1, %c0_2] : memref<128x128xf32, #tpu.memory_space<vmem>>, vector<128x128xf32>
    %c0_3 = arith.constant 0 : index
    %c0_4 = arith.constant 0 : index
    %2 = vector.load %arg2[%c0_3, %c0_4] : memref<1x128xf32, #tpu.memory_space<vmem>>, vector<1x128xf32>
    %cst = arith.constant dense<0.000000e+00> : vector<8x128xf32>
    %3 = tpu.matmul %0, %1, %cst {dimension_numbers = #tpu.dot_dimension_numbers<[1], [0], [0], [1], [0, 0, 1, 1], [], []>} : vector<8x128xf32>, vector<128x128xf32>, vector<8x128xf32> -> vector<8x128xf32>
    %4 = vector.broadcast %2 : vector<1x128xf32> to vector<8x128xf32>
    %5 = arith.addf %3, %4 : vector<8x128xf32>
    %6 = math.tanh %5 : vector<8x128xf32>
    %c0_5 = arith.constant 0 : index
    %c0_6 = arith.constant 0 : index
    %7 = vector.load %arg3[%c0_5, %c0_6] : memref<128x128xf32, #tpu.memory_space<vmem>>, vector<128x128xf32>
    %c0_7 = arith.constant 0 : index
    %c0_8 = arith.constant 0 : index
    %8 = vector.load %arg4[%c0_7, %c0_8] : memref<1x128xf32, #tpu.memory_space<vmem>>, vector<1x128xf32>
    %cst_9 = arith.constant dense<0.000000e+00> : vector<8x128xf32>
    %9 = tpu.matmul %6, %7, %cst_9 {dimension_numbers = #tpu.dot_dimension_numbers<[1], [0], [0], [1], [0, 0, 1, 1], [], []>} : vector<8x128xf32>, vector<128x128xf32>, vector<8x128xf32> -> vector<8x128xf32>
    %10 = vector.broadcast %8 : vector<1x128xf32> to vector<8x128xf32>
    %11 = arith.addf %9, %10 : vector<8x128xf32>
    %12 = math.tanh %11 : vector<8x128xf32>
    %c0_10 = arith.constant 0 : index
    %c0_11 = arith.constant 0 : index
    %13 = vector.load %arg5[%c0_10, %c0_11] : memref<128x128xf32, #tpu.memory_space<vmem>>, vector<128x128xf32>
    %c0_12 = arith.constant 0 : index
    %c0_13 = arith.constant 0 : index
    %14 = vector.load %arg6[%c0_12, %c0_13] : memref<1x128xf32, #tpu.memory_space<vmem>>, vector<1x128xf32>
    %cst_14 = arith.constant dense<0.000000e+00> : vector<8x128xf32>
    %15 = tpu.matmul %12, %13, %cst_14 {dimension_numbers = #tpu.dot_dimension_numbers<[1], [0], [0], [1], [0, 0, 1, 1], [], []>} : vector<8x128xf32>, vector<128x128xf32>, vector<8x128xf32> -> vector<8x128xf32>
    %16 = vector.broadcast %14 : vector<1x128xf32> to vector<8x128xf32>
    %17 = arith.addf %15, %16 : vector<8x128xf32>
    %c0_15 = arith.constant 0 : index
    %c0_16 = arith.constant 0 : index
    %18 = vector.load %arg7[%c0_15, %c0_16] : memref<8x128xf32, #tpu.memory_space<vmem>>, vector<8x128xf32>
    tpu.vector_store %arg7[%c0_15, %c0_16], %17 {strides = array<i32>} : memref<8x128xf32, #tpu.memory_space<vmem>>, vector<8x128xf32>,
    return
  }
}

</mosaic_0001>

<llo_original>
// kernel: _bnn_forward.1
$region0: #{_bnn_forward.1}
  #allocation0 [shape = 'u32[]', space=smem, size = 0x4, offset = 0x4, fixed_abs, tag = 'smem constant byte address 0x4 - core index']
  #allocation1 [shape = 'u32[144,128]{1,0:T(1,128)}', space=vmem, size = 0x12000, scoped, tag = 'internal scratch']
  %s0 = inlined_call_operand.vmem [shape: f32[8,128], index: 0, kind: input, shape index: {}]
  %s1 = inlined_call_operand.vmem [shape: f32[128,128], index: 1, kind: input, shape index: {}]
  %s2 = inlined_call_operand.vmem [shape: f32[1,128], index: 2, kind: input, shape index: {}]
  %s3 = inlined_call_operand.vmem [shape: f32[128,128], index: 3, kind: input, shape index: {}]
  %s4 = inlined_call_operand.vmem [shape: f32[1,128], index: 4, kind: input, shape index: {}]
  %s5 = inlined_call_operand.vmem [shape: f32[128,128], index: 5, kind: input, shape index: {}]
  %s6 = inlined_call_operand.vmem [shape: f32[1,128], index: 6, kind: input, shape index: {}]
  %s7 = inlined_call_operand.vmem [shape: f32[8,128], index: 7, kind: output, shape index: {}]
  %s8 = sld [smem:[#allocation0]]
  $region38: #{_bnn_forward.1} parent=0
    _
  %s10 = ssub.s32 1, %s8
  %s11 = scalar_select 0, %s10, %s8
  // Predicated region
  $region2: #{_bnn_forward.1} parent=0 // pred_check
    _
  $region3: #{_bnn_forward.1} parent=0 // pred_check_branch
    %13 = sbr.rel (0) target = $region5
  $region4: #{_bnn_forward.1} parent=0 // pred_region
    _
  $region5: #{_bnn_forward.1} parent=0 // pred_fallthru
    _
  // Predicated region
  $region6: #{_bnn_forward.1} parent=0 // pred_check
    _
  $region7: #{_bnn_forward.1} parent=0 // pred_check_branch
    %15 = sbr.rel (0) target = $region9
  $region8: #{_bnn_forward.1} parent=0 // pred_region
    _
  $region9: #{_bnn_forward.1} parent=0 // pred_fallthru
    _
  // Predicated region
  $region10: #{_bnn_forward.1} parent=0 // pred_check
    _
  $region11: #{_bnn_forward.1} parent=0 // pred_check_branch
    %17 = sbr.rel (0) target = $region13
  $region12: #{_bnn_forward.1} parent=0 // pred_region
    _
  $region13: #{_bnn_forward.1} parent=0 // pred_fallthru
    _
  // Predicated region
  $region14: #{_bnn_forward.1} parent=0 // pred_check
    _
  $region15: #{_bnn_forward.1} parent=0 // pred_check_branch
    %19 = sbr.rel (0) target = $region17
  $region16: #{_bnn_forward.1} parent=0 // pred_region
    _
  $region17: #{_bnn_forward.1} parent=0 // pred_fallthru
    _
  // Predicated region
  $region18: #{_bnn_forward.1} parent=0 // pred_check
    _
  $region19: #{_bnn_forward.1} parent=0 // pred_check_branch
    %21 = sbr.rel (0) target = $region21
  $region20: #{_bnn_forward.1} parent=0 // pred_region
    _
  $region21: #{_bnn_forward.1} parent=0 // pred_fallthru
    _
  // Predicated region
  $region22: #{_bnn_forward.1} parent=0 // pred_check
    _
  $region23: #{_bnn_forward.1} parent=0 // pred_check_branch
    %23 = sbr.rel (0) target = $region25
  $region24: #{_bnn_forward.1} parent=0 // pred_region
    _
  $region25: #{_bnn_forward.1} parent=0 // pred_fallthru
    _
  // Predicated region
  $region26: #{_bnn_forward.1} parent=0 // pred_check
    _
  $region27: #{_bnn_forward.1} parent=0 // pred_check_branch
    %25 = sbr.rel (0) target = $region29
  $region28: #{_bnn_forward.1} parent=0 // pred_region
    _
  $region29: #{_bnn_forward.1} parent=0 // pred_fallthru
    _
  %v26 = vld [vmem:[%s0] sm:$0xff]
  %v27 = vld [vmem:[%s1] sm:$0xff]
  %v28 = vld [vmem:[%s1 + $0x8] sm:$0xff]
  %v29 = vld [vmem:[%s1 + $0x10] sm:$0xff]
  %v30 = vld [vmem:[%s1 + $0x18] sm:$0xff]
  %v31 = vld [vmem:[%s1 + $0x20] sm:$0xff]
  %v32 = vld [vmem:[%s1 + $0x28] sm:$0xff]
  %v33 = vld [vmem:[%s1 + $0x30] sm:$0xff]
  %v34 = vld [vmem:[%s1 + $0x38] sm:$0xff]
  %v35 = vld [vmem:[%s1 + $0x40] sm:$0xff]
  %v36 = vld [vmem:[%s1 + $0x48] sm:$0xff]
  %v37 = vld [vmem:[%s1 + $0x50] sm:$0xff]
  %v38 = vld [vmem:[%s1 + $0x58] sm:$0xff]
  %v39 = vld [vmem:[%s1 + $0x60] sm:$0xff]
  %v40 = vld [vmem:[%s1 + $0x68] sm:$0xff]
  %v41 = vld [vmem:[%s1 + $0x70] sm:$0xff]
  %v42 = vld [vmem:[%s1 + $0x78] sm:$0xff]
  %v43 = vld [vmem:[%s2] sm:$0x1]
  %v45 = vlaneseq
  %v46 = vshrl.u32 %v45, 7
  %v47 = vsub.s32 0, %v46
  %v48 = vrot.slane %v43, %v47
  %50 = vmatprep.subr.mxu0 0.0
  %51 = vmatpush1.msra.mxu0 %v42
  %52 = vmatprep.subr.mxu0 0.0
  %53 = vmatpush1.msra.mxu0 %v41
  %54 = vmatprep.subr.mxu0 0.0
  %55 = vmatpush1.msra.mxu0 %v40
  %56 = vmatprep.subr.mxu0 0.0
  %57 = vmatpush1.msra.mxu0 %v39
  %58 = vmatprep.subr.mxu0 0.0
  %59 = vmatpush1.msra.mxu0 %v38
  %60 = vmatprep.subr.mxu0 0.0
  %61 = vmatpush1.msra.mxu0 %v37
  %62 = vmatprep.subr.mxu0 0.0
  %63 = vmatpush1.msra.mxu0 %v36
  %64 = vmatprep.subr.mxu0 0.0
  %65 = vmatpush1.msra.mxu0 %v35
  %66 = vmatprep.subr.mxu0 0.0
  %67 = vmatpush1.msra.mxu0 %v34
  %68 = vmatprep.subr.mxu0 0.0
  %69 = vmatpush1.msra.mxu0 %v33
  %70 = vmatprep.subr.mxu0 0.0
  %71 = vmatpush1.msra.mxu0 %v32
  %72 = vmatprep.subr.mxu0 0.0
  %73 = vmatpush1.msra.mxu0 %v31
  %74 = vmatprep.subr.mxu0 0.0
  %75 = vmatpush1.msra.mxu0 %v30
  %76 = vmatprep.subr.mxu0 0.0
  %77 = vmatpush1.msra.mxu0 %v29
  %78 = vmatprep.subr.mxu0 0.0
  %79 = vmatpush1.msra.mxu0 %v28
  %80 = vmatprep.subr.mxu0 0.0
  %81 = vmatpush1.msra.mxu0 %v27
  %82 = vmatprep.subr.mxu0 0.0
  %83 = vmatpush2.msra.mxu0 0.0
  %84 = vmatprep.subr.mxu0 0.0
  %85 = vmatpush2.msra.mxu0 0.0
  %86 = vmatprep.subr.mxu0 0.0
  %87 = vmatpush2.msra.mxu0 0.0
  %88 = vmatprep.subr.mxu0 0.0
  %89 = vmatpush2.msra.mxu0 0.0
  %90 = vmatprep.subr.mxu0 0.0
  %91 = vmatpush2.msra.mxu0 0.0
  %92 = vmatprep.subr.mxu0 0.0
  %93 = vmatpush2.msra.mxu0 0.0
  %94 = vmatprep.subr.mxu0 0.0
  %95 = vmatpush2.msra.mxu0 0.0
  %96 = vmatprep.subr.mxu0 0.0
  %97 = vmatpush2.msra.mxu0 0.0
  %98 = vmatprep.subr.mxu0 0.0
  %99 = vmatpush2.msra.mxu0 0.0
  %100 = vmatprep.subr.mxu0 0.0
  %101 = vmatpush2.msra.mxu0 0.0
  %102 = vmatprep.subr.mxu0 0.0
  %103 = vmatpush2.msra.mxu0 0.0
  %104 = vmatprep.subr.mxu0 0.0
  %105 = vmatpush2.msra.mxu0 0.0
  %106 = vmatprep.subr.mxu0 0.0
  %107 = vmatpush2.msra.mxu0 0.0
  %108 = vmatprep.subr.mxu0 0.0
  %109 = vmatpush2.msra.mxu0 0.0
  %110 = vmatprep.subr.mxu0 0.0
  %111 = vmatpush2.msra.mxu0 0.0
  %112 = vmatprep.subr.mxu0 0.0
  %113 = vmatpush2.msra.mxu0 0.0
  %114 = vmatprep.mubr.f32.mxu0 0.0
  %115 = vmatmul.mubr.f32.gmra.mxu0 %v26
  %v116 = vpop.f32.mrf.mxu0
  %v117 = vadd.f32 %v48, %v116
  %v118 = vpop.f32.mrf.mxu0
  %119 = vdwg.mxu0
  %v120 = vtanh.pop %v117
  %v121 = vld [vmem:[%s3] sm:$0xff]
  %v122 = vld [vmem:[%s3 + $0x8] sm:$0xff]
  %v123 = vld [vmem:[%s3 + $0x10] sm:$0xff]
  %v124 = vld [vmem:[%s3 + $0x18] sm:$0xff]
  %v125 = vld [vmem:[%s3 + $0x20] sm:$0xff]
  %v126 = vld [vmem:[%s3 + $0x28] sm:$0xff]
  %v127 = vld [vmem:[%s3 + $0x30] sm:$0xff]
  %v128 = vld [vmem:[%s3 + $0x38] sm:$0xff]
  %v129 = vld [vmem:[%s3 + $0x40] sm:$0xff]
  %v130 = vld [vmem:[%s3 + $0x48] sm:$0xff]
  %v131 = vld [vmem:[%s3 + $0x50] sm:$0xff]
  %v132 = vld [vmem:[%s3 + $0x58] sm:$0xff]
  %v133 = vld [vmem:[%s3 + $0x60] sm:$0xff]
  %v134 = vld [vmem:[%s3 + $0x68] sm:$0xff]
  %v135 = vld [vmem:[%s3 + $0x70] sm:$0xff]
  %v136 = vld [vmem:[%s3 + $0x78] sm:$0xff]
  %v137 = vld [vmem:[%s4] sm:$0x1]
  %v139 = vlaneseq
  %v140 = vshrl.u32 %v139, 7
  %v141 = vsub.s32 0, %v140
  %v142 = vrot.slane %v137, %v141
  %144 = vmatprep.subr.mxu0 0.0
  %145 = vmatpush1.msra.mxu0 %v136
  %146 = vmatprep.subr.mxu0 0.0
  %147 = vmatpush1.msra.mxu0 %v135
  %148 = vmatprep.subr.mxu0 0.0
  %149 = vmatpush1.msra.mxu0 %v134
  %150 = vmatprep.subr.mxu0 0.0
  %151 = vmatpush1.msra.mxu0 %v133
  %152 = vmatprep.subr.mxu0 0.0
  %153 = vmatpush1.msra.mxu0 %v132
  %154 = vmatprep.subr.mxu0 0.0
  %155 = vmatpush1.msra.mxu0 %v131
  %156 = vmatprep.subr.mxu0 0.0
  %157 = vmatpush1.msra.mxu0 %v130
  %158 = vmatprep.subr.mxu0 0.0
  %159 = vmatpush1.msra.mxu0 %v129
  %160 = vmatprep.subr.mxu0 0.0
  %161 = vmatpush1.msra.mxu0 %v128
  %162 = vmatprep.subr.mxu0 0.0
  %163 = vmatpush1.msra.mxu0 %v127
  %164 = vmatprep.subr.mxu0 0.0
  %165 = vmatpush1.msra.mxu0 %v126
  %166 = vmatprep.subr.mxu0 0.0
  %167 = vmatpush1.msra.mxu0 %v125
  %168 = vmatprep.subr.mxu0 0.0
  %169 = vmatpush1.msra.mxu0 %v124
  %170 = vmatprep.subr.mxu0 0.0
  %171 = vmatpush1.msra.mxu0 %v123
  %172 = vmatprep.subr.mxu0 0.0
  %173 = vmatpush1.msra.mxu0 %v122
  %174 = vmatprep.subr.mxu0 0.0
  %175 = vmatpush1.msra.mxu0 %v121
  %176 = vmatprep.subr.mxu0 0.0
  %177 = vmatpush2.msra.mxu0 0.0
  %178 = vmatprep.subr.mxu0 0.0
  %179 = vmatpush2.msra.mxu0 0.0
  %180 = vmatprep.subr.mxu0 0.0
  %181 = vmatpush2.msra.mxu0 0.0
  %182 = vmatprep.subr.mxu0 0.0
  %183 = vmatpush2.msra.mxu0 0.0
  %184 = vmatprep.subr.mxu0 0.0
  %185 = vmatpush2.msra.mxu0 0.0
  %186 = vmatprep.subr.mxu0 0.0
  %187 = vmatpush2.msra.mxu0 0.0
  %188 = vmatprep.subr.mxu0 0.0
  %189 = vmatpush2.msra.mxu0 0.0
  %190 = vmatprep.subr.mxu0 0.0
  %191 = vmatpush2.msra.mxu0 0.0
  %192 = vmatprep.subr.mxu0 0.0
  %193 = vmatpush2.msra.mxu0 0.0
  %194 = vmatprep.subr.mxu0 0.0
  %195 = vmatpush2.msra.mxu0 0.0
  %196 = vmatprep.subr.mxu0 0.0
  %197 = vmatpush2.msra.mxu0 0.0
  %198 = vmatprep.subr.mxu0 0.0
  %199 = vmatpush2.msra.mxu0 0.0
  %200 = vmatprep.subr.mxu0 0.0
  %201 = vmatpush2.msra.mxu0 0.0
  %202 = vmatprep.subr.mxu0 0.0
  %203 = vmatpush2.msra.mxu0 0.0
  %204 = vmatprep.subr.mxu0 0.0
  %205 = vmatpush2.msra.mxu0 0.0
  %206 = vmatprep.subr.mxu0 0.0
  %207 = vmatpush2.msra.mxu0 0.0
  %208 = vmatprep.mubr.f32.mxu0 0.0
  %209 = vmatmul.mubr.f32.gmra.mxu0 %v120
  %v210 = vpop.f32.mrf.mxu0
  %v211 = vadd.f32 %v142, %v210
  %v212 = vpop.f32.mrf.mxu0
  %213 = vdwg.mxu0
  %v214 = vtanh.pop %v211
  %v215 = vld [vmem:[%s5] sm:$0xff]
  %v216 = vld [vmem:[%s5 + $0x8] sm:$0xff]
  %v217 = vld [vmem:[%s5 + $0x10] sm:$0xff]
  %v218 = vld [vmem:[%s5 + $0x18] sm:$0xff]
  %v219 = vld [vmem:[%s5 + $0x20] sm:$0xff]
  %v220 = vld [vmem:[%s5 + $0x28] sm:$0xff]
  %v221 = vld [vmem:[%s5 + $0x30] sm:$0xff]
  %v222 = vld [vmem:[%s5 + $0x38] sm:$0xff]
  %v223 = vld [vmem:[%s5 + $0x40] sm:$0xff]
  %v224 = vld [vmem:[%s5 + $0x48] sm:$0xff]
  %v225 = vld [vmem:[%s5 + $0x50] sm:$0xff]
  %v226 = vld [vmem:[%s5 + $0x58] sm:$0xff]
  %v227 = vld [vmem:[%s5 + $0x60] sm:$0xff]
  %v228 = vld [vmem:[%s5 + $0x68] sm:$0xff]
  %v229 = vld [vmem:[%s5 + $0x70] sm:$0xff]
  %v230 = vld [vmem:[%s5 + $0x78] sm:$0xff]
  %v231 = vld [vmem:[%s6] sm:$0x1]
  %v233 = vlaneseq
  %v234 = vshrl.u32 %v233, 7
  %v235 = vsub.s32 0, %v234
  %v236 = vrot.slane %v231, %v235
  %238 = vmatprep.subr.mxu0 0.0
  %239 = vmatpush1.msra.mxu0 %v230
  %240 = vmatprep.subr.mxu0 0.0
  %241 = vmatpush1.msra.mxu0 %v229
  %242 = vmatprep.subr.mxu0 0.0
  %243 = vmatpush1.msra.mxu0 %v228
  %244 = vmatprep.subr.mxu0 0.0
  %245 = vmatpush1.msra.mxu0 %v227
  %246 = vmatprep.subr.mxu0 0.0
  %247 = vmatpush1.msra.mxu0 %v226
  %248 = vmatprep.subr.mxu0 0.0
  %249 = vmatpush1.msra.mxu0 %v225
  %250 = vmatprep.subr.mxu0 0.0
  %251 = vmatpush1.msra.mxu0 %v224
  %252 = vmatprep.subr.mxu0 0.0
  %253 = vmatpush1.msra.mxu0 %v223
  %254 = vmatprep.subr.mxu0 0.0
  %255 = vmatpush1.msra.mxu0 %v222
  %256 = vmatprep.subr.mxu0 0.0
  %257 = vmatpush1.msra.mxu0 %v221
  %258 = vmatprep.subr.mxu0 0.0
  %259 = vmatpush1.msra.mxu0 %v220
  %260 = vmatprep.subr.mxu0 0.0
  %261 = vmatpush1.msra.mxu0 %v219
  %262 = vmatprep.subr.mxu0 0.0
  %263 = vmatpush1.msra.mxu0 %v218
  %264 = vmatprep.subr.mxu0 0.0
  %265 = vmatpush1.msra.mxu0 %v217
  %266 = vmatprep.subr.mxu0 0.0
  %267 = vmatpush1.msra.mxu0 %v216
  %268 = vmatprep.subr.mxu0 0.0
  %269 = vmatpush1.msra.mxu0 %v215
  %270 = vmatprep.subr.mxu0 0.0
  %271 = vmatpush2.msra.mxu0 0.0
  %272 = vmatprep.subr.mxu0 0.0
  %273 = vmatpush2.msra.mxu0 0.0
  %274 = vmatprep.subr.mxu0 0.0
  %275 = vmatpush2.msra.mxu0 0.0
  %276 = vmatprep.subr.mxu0 0.0
  %277 = vmatpush2.msra.mxu0 0.0
  %278 = vmatprep.subr.mxu0 0.0
  %279 = vmatpush2.msra.mxu0 0.0
  %280 = vmatprep.subr.mxu0 0.0
  %281 = vmatpush2.msra.mxu0 0.0
  %282 = vmatprep.subr.mxu0 0.0
  %283 = vmatpush2.msra.mxu0 0.0
  %284 = vmatprep.subr.mxu0 0.0
  %285 = vmatpush2.msra.mxu0 0.0
  %286 = vmatprep.subr.mxu0 0.0
  %287 = vmatpush2.msra.mxu0 0.0
  %288 = vmatprep.subr.mxu0 0.0
  %289 = vmatpush2.msra.mxu0 0.0
  %290 = vmatprep.subr.mxu0 0.0
  %291 = vmatpush2.msra.mxu0 0.0
  %292 = vmatprep.subr.mxu0 0.0
  %293 = vmatpush2.msra.mxu0 0.0
  %294 = vmatprep.subr.mxu0 0.0
  %295 = vmatpush2.msra.mxu0 0.0
  %296 = vmatprep.subr.mxu0 0.0
  %297 = vmatpush2.msra.mxu0 0.0
  %298 = vmatprep.subr.mxu0 0.0
  %299 = vmatpush2.msra.mxu0 0.0
  %300 = vmatprep.subr.mxu0 0.0
  %301 = vmatpush2.msra.mxu0 0.0
  %302 = vmatprep.mubr.f32.mxu0 0.0
  %303 = vmatmul.mubr.f32.gmra.mxu0 %v214
  %v304 = vpop.f32.mrf.mxu0
  %v305 = vadd.f32 %v236, %v304
  %v306 = vpop.f32.mrf.mxu0
  %307 = vdwg.mxu0
  %308 = vst [vmem:[%s7] sm:$0xff] %v305
  // Predicated region
  $region30: #{_bnn_forward.1} parent=0 // pred_check
    _
  $region31: #{_bnn_forward.1} parent=0 // pred_check_branch
    %310 = sbr.rel (0) target = $region33
  $region32: #{_bnn_forward.1} parent=0 // pred_region
    _
  $region33: #{_bnn_forward.1} parent=0 // pred_fallthru
    _
  // Predicated region
  $region34: #{_bnn_forward.1} parent=0 // pred_check
    _
  $region35: #{_bnn_forward.1} parent=0 // pred_check_branch
    %312 = sbr.rel (0) target = $region37
  $region36: #{_bnn_forward.1} parent=0 // pred_region
    _
  $region37: #{_bnn_forward.1} parent=0 // pred_fallthru
    _

</llo_original>
